<compile_context>
chip_gen: v5e
topology: v5e:2x2
jax: 0.10.0
libtpu: 0.0.40
codegen_flags: <defaults>
</compile_context>

<pallas_src>
import functools

import numpy as np
import jax
import jax.numpy as jnp
from jax.experimental import pallas as pl
from jax.experimental.pallas import tpu as pltpu

_LANE = 128        # lane width (last dim)
_SUBLANE = 8       # f32 sublane count
_TILE_B_ALIGN = 16 # bf16 sublane packing (also a multiple of the f32 sublane 8)


def _round_up(x, m):
    return ((x + m - 1) // m) * m


def _cdiv(a, b):
    return (a + b - 1) // b


def _itemsize(dt):
    return np.dtype(dt).itemsize


# Feature-detect single-buffering for VMEM-resident params (constant index maps
# never need re-fetch). Fall back to default double-buffering on older jax.
try:
    pl.BlockSpec((8, 128), lambda i: (0, 0), pipeline_mode=pl.Buffered(1))
    _RESIDENT_SPEC_KW = {"pipeline_mode": pl.Buffered(1)}
    _RESIDENT_BUFFERS = 1
except Exception:  # pragma: no cover
    _RESIDENT_SPEC_KW = {}
    _RESIDENT_BUFFERS = 2


def _hw_info():
    """(vmem_capacity_bytes, bf16_vpu_capable, two_tensorcores) — trace-time query."""
    kind = ""
    try:
        kind = jax.devices()[0].device_kind.lower()
    except Exception:
        pass
    vmem_cap = None
    try:
        vmem_cap = int(pltpu.get_tpu_info().vmem_capacity_bytes)
    except Exception:
        vmem_cap = None
    if not vmem_cap or vmem_cap <= 0:
        if "v7" in kind:
            vmem_cap = 64 << 20
        elif any(g in kind for g in ("v4", "v5", "v6")):
            vmem_cap = 128 << 20
        else:
            vmem_cap = 64 << 20
    bf16_vpu = ("v6" in kind) or ("v7" in kind)
    two_cores = "v7" in kind
    return vmem_cap, bf16_vpu, two_cores


def prepare_decoder_params(weights, biases, param_dtype=jnp.bfloat16):
    """Pad every feature dim to a multiple of 128 lanes and cast weights once.

    Run this at model-setup time (outside jit) so the per-call forward never
    re-pads / re-casts the parameter set.

    Returns a flat tuple (w0, b0, w1, b1, ...): wi padded (pin, pout) param_dtype,
    bi padded (1, pout) float32.
    """
    dims = [weights[0].shape[0]] + [w.shape[1] for w in weights]
    pdims = [_round_up(d, _LANE) for d in dims]
    flat = []
    for li, (w, b) in enumerate(zip(weights, biases)):
        in_d, out_d = w.shape
        pin, pout = pdims[li], pdims[li + 1]
        w_p = jnp.zeros((pin, pout), dtype=param_dtype)
        w_p = w_p.at[:in_d, :out_d].set(w.astype(param_dtype))
        b_p = jnp.zeros((1, pout), dtype=jnp.float32)
        b_p = b_p.at[0, :out_d].set(b.astype(jnp.float32))
        flat.append(w_p)
        flat.append(b_p)
    return tuple(flat)


def _make_resident_kernel(num_layers, compute_dtype, carry_dtype):
    """All weights VMEM-resident: full MLP over one batch tile."""

    def kernel(*refs):
        z_ref, out_ref = refs[0], refs[-1]
        params = refs[1:-1]
        h = z_ref[...].astype(compute_dtype)
        for li in range(num_layers):
            w_ref, b_ref = params[2 * li], params[2 * li + 1]
            acc = jnp.dot(h, w_ref[...], preferred_element_type=jnp.float32)
            if li < num_layers - 1:
                hc = acc.astype(carry_dtype) + b_ref[...].astype(carry_dtype)
                h = jnp.maximum(hc, 0.0).astype(compute_dtype)
            else:
                out_ref[...] = (acc + b_ref[...].astype(jnp.float32)).astype(out_ref.dtype)

    return kernel


def _make_streamed_kernel(num_hidden, compute_dtype, carry_dtype):
    """Hidden stack resident; last layer's (W, b) streamed in N-tiles (grid axis 1).

    The hidden-stack activation is computed once per batch tile (inner grid
    index j == 0) into a VMEM scratch and reused for every N-tile.
    """

    def kernel(*refs):
        z_ref = refs[0]
        hidden = refs[1:1 + 2 * num_hidden]
        w_last = refs[1 + 2 * num_hidden]
        b_last = refs[2 + 2 * num_hidden]
        out_ref = refs[3 + 2 * num_hidden]
        h_scr = refs[4 + 2 * num_hidden]

        @pl.when(pl.program_id(1) == 0)
        def _():
            h = z_ref[...].astype(compute_dtype)
            for li in range(num_hidden):
                w_ref, b_ref = hidden[2 * li], hidden[2 * li + 1]
                acc = jnp.dot(h, w_ref[...], preferred_element_type=jnp.float32)
                hc = acc.astype(carry_dtype) + b_ref[...].astype(carry_dtype)
                h = jnp.maximum(hc, 0.0).astype(compute_dtype)
            h_scr[...] = h

        acc = jnp.dot(h_scr[...], w_last[...], preferred_element_type=jnp.float32)
        out_ref[...] = (acc + b_last[...].astype(jnp.float32)).astype(out_ref.dtype)

    return kernel


def dense_decoder_forward(
    z,
    flat_params,
    seq_len,
    feat_dim,
    *,
    out_dtype=jnp.float32,      # bf16 halves output writeback if downstream tolerates
    max_tile_b=512,
    force_stream_last=False,    # testing hook: force the N-tiled last-layer path
    last_tile_n=None,           # testing hook: force the N-tile width (multiple of 128)
):
    """DenseDecoder forward: z (batch, latent) -> (batch, seq_len, feat_dim).

    `flat_params` must come from prepare_decoder_params (padded, pre-cast).
    """
    num_layers = len(flat_params) // 2
    batch, latent_dim = z.shape
    out_dim = seq_len * feat_dim
    pdims = [flat_params[0].shape[0]] + [flat_params[2 * i].shape[1] for i in range(num_layers)]
    assert pdims[-1] >= out_dim

    param_dtype = flat_params[0].dtype
    compute_dtype = param_dtype

    vmem_cap, bf16_vpu, two_cores = _hw_info()
    budget = int(0.75 * vmem_cap)  # ~96 MiB on v5e/v6e, ~48 MiB on v7x

    # bf16 activation carry (bias+ReLU in bf16) only where the VPU supports it.
    if bf16_vpu and np.dtype(compute_dtype) == np.dtype(jnp.bfloat16):
        carry_dtype = compute_dtype
    else:
        carry_dtype = jnp.float32

    p_item = _itemsize(param_dtype)
    c_item = _itemsize(compute_dtype)
    k_item = _itemsize(carry_dtype)
    o_item = _itemsize(out_dtype)

    param_bytes = sum(int(p.size) * p.dtype.itemsize for p in flat_params)
    hidden_param_bytes = sum(int(p.size) * p.dtype.itemsize for p in flat_params[:-2])

    def _act_row(last_out_cols):
        # Per-row activation peak across the unrolled chain:
        # compute-dtype lhs + f32 matmul result + carried next activation.
        peak = 0
        for li in range(num_layers):
            out_cols = pdims[li + 1] if li < num_layers - 1 else last_out_cols
            peak = max(peak, pdims[li] * c_item + out_cols * 4 + out_cols * k_item)
        return peak

    def _rows_that_fit(resident_bytes, last_out_cols, scratch_cols):
        per_row = (2 * pdims[0] * c_item        # double-buffered z tile
                   + 2 * last_out_cols * o_item  # double-buffered out tile
                   + scratch_cols * c_item       # hidden-activation scratch (streamed path)
                   + _act_row(last_out_cols))
        avail = budget - resident_bytes
        rows = avail // per_row if avail > 0 else 0
        return rows, per_row

    # ---- Choose layout: all-resident vs. streamed last layer. ----
    stream_last = bool(force_stream_last)
    resident_all = _RESIDENT_BUFFERS * param_bytes
    rows, per_row = _rows_that_fit(resident_all, pdims[-1], 0)
    if not stream_last and rows < _TILE_B_ALIGN:
        stream_last = True

    if stream_last:
        pin_last = pdims[-2]
        m = pdims[-1] // _LANE
        if last_tile_n is not None:
            tile_n = int(last_tile_n)
            assert tile_n % _LANE == 0 and pdims[-1] % tile_n == 0
        else:
            # Largest divisor of the padded output width whose double-buffered
            # W_last/b_last stream keeps resident usage <= half the budget.
            tile_n = _LANE
            for d in range(m, 0, -1):
                if m % d:
                    continue
                cand = d * _LANE
                stream_bytes = 2 * (pin_last * cand * p_item + cand * 4)
                if _RESIDENT_BUFFERS * hidden_param_bytes + stream_bytes <= budget // 2:
                    tile_n = cand
                    break
        stream_bytes = 2 * (pin_last * tile_n * p_item + tile_n * 4)
        resident = _RESIDENT_BUFFERS * hidden_param_bytes + stream_bytes
        rows, per_row = _rows_that_fit(resident, tile_n, pin_last)
        if rows < _TILE_B_ALIGN:
            # TODO(synk): also stream the hidden-layer weights (K-tiling) for
            # decoders whose hidden stack alone exceeds the VMEM budget.
            raise ValueError(
                "DenseDecoder parameters do not fit the VMEM budget "
                f"({budget} bytes) even with the last layer streamed.")
    else:
        tile_n = pdims[-1]
        resident = resident_all

    # ---- Batch tile: multiple of 16; on v7x ensure >= 2 grid steps when possible. ----
    tile_b = (min(rows, max_tile_b) // _TILE_B_ALIGN) * _TILE_B_ALIGN
    tile_b = max(_TILE_B_ALIGN, tile_b)
    batch_r = _round_up(max(batch, 1), _TILE_B_ALIGN)
    if two_cores and batch_r >= 2 * _TILE_B_ALIGN:
        tile_b = min(tile_b, _round_up(_cdiv(batch_r, 2), _TILE_B_ALIGN))
    tile_b = min(tile_b, batch_r)
    batch_pad = _round_up(max(batch, 1), tile_b)

    # ---- VMEM limit: estimate + headroom, capped at 85% of physical (v7x-safe). ----
    est_bytes = resident + tile_b * per_row
    vmem_limit = int(min(max(est_bytes + (4 << 20), 32 << 20), int(0.85 * vmem_cap)))

    flops = 2 * batch_pad * sum(pdims[i] * pdims[i + 1] for i in range(num_layers))
    bytes_accessed = (param_bytes
                      + batch_pad * pdims[0] * c_item
                      + batch_pad * pdims[-1] * o_item)
    cost = pl.CostEstimate(flops=flops, transcendentals=0,
                           bytes_accessed=bytes_accessed)

    # ---- Pad z (zero tail rows / zero latent lanes) directly in compute dtype. ----
    z_p = jnp.zeros((batch_pad, pdims[0]), dtype=compute_dtype)
    z_p = z_p.at[:batch, :latent_dim].set(z.astype(compute_dtype))

    out_shape = jax.ShapeDtypeStruct((batch_pad, pdims[-1]), out_dtype)

    if not stream_last:
        in_specs = [pl.BlockSpec((tile_b, pdims[0]), lambda i: (i, 0))]
        for li in range(num_layers):
            pin, pout = pdims[li], pdims[li + 1]
            in_specs.append(pl.BlockSpec((pin, pout), lambda i: (0, 0), **_RESIDENT_SPEC_KW))
            in_specs.append(pl.BlockSpec((1, pout), lambda i: (0, 0), **_RESIDENT_SPEC_KW))
        out_spec = pl.BlockSpec((tile_b, pdims[-1]), lambda i: (i, 0))
        grid = (batch_pad // tile_b,)
        kernel = _make_resident_kernel(num_layers, compute_dtype, carry_dtype)
        dim_sem = ("parallel",)
        scratch_shapes = ()
    else:
        in_specs = [pl.BlockSpec((tile_b, pdims[0]), lambda i, j: (i, 0))]
        for li in range(num_layers - 1):
            pin, pout = pdims[li], pdims[li + 1]
            in_specs.append(pl.BlockSpec((pin, pout), lambda i, j: (0, 0), **_RESIDENT_SPEC_KW))
            in_specs.append(pl.BlockSpec((1, pout), lambda i, j: (0, 0), **_RESIDENT_SPEC_KW))
        in_specs.append(pl.BlockSpec((pdims[-2], tile_n), lambda i, j: (0, j)))  # W_last streamed
        in_specs.append(pl.BlockSpec((1, tile_n), lambda i, j: (0, j)))          # b_last streamed
        out_spec = pl.BlockSpec((tile_b, tile_n), lambda i, j: (i, j))
        grid = (batch_pad // tile_b, pdims[-1] // tile_n)
        kernel = _make_streamed_kernel(num_layers - 1, compute_dtype, carry_dtype)
        dim_sem = ("parallel", "arbitrary")
        scratch_shapes = (pltpu.VMEM((tile_b, pdims[-2]), compute_dtype),)

    out_flat = pl.pallas_call(
        kernel,
        out_shape=out_shape,
        grid=grid,
        in_specs=in_specs,
        out_specs=out_spec,
        scratch_shapes=scratch_shapes,
        compiler_params=pltpu.CompilerParams(
            dimension_semantics=dim_sem,
            vmem_limit_bytes=vmem_limit,
        ),
        cost_estimate=cost,
    )(z_p, *flat_params)

    # Slice off batch/lane padding, then reshape like torch's .view(-1, S, F).
    out = out_flat[:batch, :out_dim]
    return out.reshape(-1, seq_len, feat_dim)


def _init_params(key, latent_dim, hidden_layer_sizes, seq_len, feat_dim):
    """Deterministic init mimicking nn.Linear default (uniform +/- 1/sqrt(fan_in))."""
    sizes = [latent_dim] + list(hidden_layer_sizes) + [seq_len * feat_dim]
    weights, biases = [], []
    for i in range(len(sizes) - 1):
        fan_in, fan_out = sizes[i], sizes[i + 1]
        key, kw, kb = jax.random.split(key, 3)
        bound = 1.0 / (fan_in ** 0.5)
        w = jax.random.uniform(kw, (fan_in, fan_out), jnp.float32, minval=-bound, maxval=bound)
        b = jax.random.uniform(kb, (fan_out,), jnp.float32, minval=-bound, maxval=bound)
        weights.append(w)
        biases.append(b)
    return weights, biases


def _reference_forward(z, weights, biases, seq_len, feat_dim):
    """Pure-JAX f32 reference (mirrors the PyTorch forward)."""
    h = z
    for i, (w, b) in enumerate(zip(weights, biases)):
        h = h @ w + b
        if i < len(weights) - 1:
            h = jnp.maximum(h, 0.0)
    return h.reshape(-1, seq_len, feat_dim)


if __name__ == "__main__":
    key = jax.random.PRNGKey(0)

    # --- Test 1: small decoder, all weights VMEM-resident (1-D batch grid). ---
    batch, seq_len, feat_dim = 2, 8, 4
    latent_dim, hidden = 8, (32, 64)
    kz, kp = jax.random.split(key)
    z = jax.random.normal(kz, (batch, latent_dim), dtype=jnp.float32)
    weights, biases = _init_params(kp, latent_dim, hidden, seq_len, feat_dim)
    flat = prepare_decoder_params(weights, biases)      # pad + bf16 cast ONCE (outside jit)
    fwd = jax.jit(functools.partial(dense_decoder_forward,
                                    seq_len=seq_len, feat_dim=feat_dim))
    out = jax.block_until_ready(fwd(z, flat))
    ref = _reference_forward(z, weights, biases, seq_len, feat_dim)
    assert out.shape == (batch, seq_len, feat_dim), out.shape
    assert jnp.allclose(out, ref, atol=5e-2, rtol=5e-2), "resident path mismatch"

    # --- Test 2: exercise the streamed-last-layer (N-tiled) fallback path. ---
    seq_len2, feat_dim2, batch2 = 16, 32, 40            # padded final width 512 -> 4 N-tiles
    kz2, kp2 = jax.random.split(jax.random.PRNGKey(0))
    z2 = jax.random.normal(kz2, (batch2, latent_dim), dtype=jnp.float32)
    weights2, biases2 = _init_params(kp2, latent_dim, hidden, seq_len2, feat_dim2)
    flat2 = prepare_decoder_params(weights2, biases2)
    fwd2 = jax.jit(functools.partial(dense_decoder_forward,
                                     seq_len=seq_len2, feat_dim=feat_dim2,
                                     force_stream_last=True, last_tile_n=128,
                                     max_tile_b=16))
    out2 = jax.block_until_ready(fwd2(z2, flat2))
    ref2 = _reference_forward(z2, weights2, biases2, seq_len2, feat_dim2)
    assert out2.shape == (batch2, seq_len2, feat_dim2), out2.shape
    assert jnp.allclose(out2, ref2, atol=5e-2, rtol=5e-2), "streamed path mismatch"

    print("KERNEL_OK")
</pallas_src>

<mosaic_0001>
module attributes {stable_mosaic.version = 11 : i64} {
  func.func @kernel(%arg0: i32, %arg1: memref<16x128xbf16, #tpu.memory_space<vmem>>, %arg2: memref<128x128xbf16, #tpu.memory_space<vmem>>, %arg3: memref<1x128xf32, #tpu.memory_space<vmem>>, %arg4: memref<128x128xbf16, #tpu.memory_space<vmem>>, %arg5: memref<1x128xf32, #tpu.memory_space<vmem>>, %arg6: memref<128x128xbf16, #tpu.memory_space<vmem>>, %arg7: memref<1x128xf32, #tpu.memory_space<vmem>>, %arg8: memref<16x128xf32, #tpu.memory_space<vmem>>) attributes {dimension_semantics = [#tpu.dimension_semantics<parallel>], iteration_bounds = array<i64: 1>, scalar_prefetch = 0 : i64, scratch_operands = 0 : i64, tpu.core_type = #tpu.core_type<tc>, window_params = [{transform_indices = @transform_0, window_bounds = array<i64: 16, 128>}, {pipeline_mode = #tpu.pipeline_mode<synchronous>, transform_indices = @transform_1, window_bounds = array<i64: 128, 128>}, {pipeline_mode = #tpu.pipeline_mode<synchronous>, transform_indices = @transform_2, window_bounds = array<i64: 1, 128>}, {pipeline_mode = #tpu.pipeline_mode<synchronous>, transform_indices = @transform_3, window_bounds = array<i64: 128, 128>}, {pipeline_mode = #tpu.pipeline_mode<synchronous>, transform_indices = @transform_4, window_bounds = array<i64: 1, 128>}, {pipeline_mode = #tpu.pipeline_mode<synchronous>, transform_indices = @transform_5, window_bounds = array<i64: 128, 128>}, {pipeline_mode = #tpu.pipeline_mode<synchronous>, transform_indices = @transform_6, window_bounds = array<i64: 1, 128>}, {transform_indices = @transform_7, window_bounds = array<i64: 16, 128>}]} {
    %c0 = arith.constant 0 : index
    %c0_0 = arith.constant 0 : index
    %0 = vector.load %arg1[%c0, %c0_0] : memref<16x128xbf16, #tpu.memory_space<vmem>>, vector<16x128xbf16>
    %c0_1 = arith.constant 0 : index
    %c0_2 = arith.constant 0 : index
    %1 = vector.load %arg2[%c0_1, %c0_2] : memref<128x128xbf16, #tpu.memory_space<vmem>>, vector<128x128xbf16>
    %cst = arith.constant dense<0.000000e+00> : vector<16x128xf32>
    %2 = tpu.matmul %0, %1, %cst {dimension_numbers = #tpu.dot_dimension_numbers<[1], [0], [0], [1], [0, 0, 1, 1], [], []>} : vector<16x128xbf16>, vector<128x128xbf16>, vector<16x128xf32> -> vector<16x128xf32>
    %c0_3 = arith.constant 0 : index
    %c0_4 = arith.constant 0 : index
    %3 = vector.load %arg3[%c0_3, %c0_4] : memref<1x128xf32, #tpu.memory_space<vmem>>, vector<1x128xf32>
    %4 = vector.broadcast %3 : vector<1x128xf32> to vector<16x128xf32>
    %5 = arith.addf %2, %4 : vector<16x128xf32>
    %cst_5 = arith.constant 0.000000e+00 : f32
    %6 = vector.broadcast %cst_5 : f32 to vector<16x128xf32>
    %7 = arith.maximumf %5, %6 : vector<16x128xf32>
    %8 = arith.truncf %7 : vector<16x128xf32> to vector<16x128xbf16>
    %c0_6 = arith.constant 0 : index
    %c0_7 = arith.constant 0 : index
    %9 = vector.load %arg4[%c0_6, %c0_7] : memref<128x128xbf16, #tpu.memory_space<vmem>>, vector<128x128xbf16>
    %cst_8 = arith.constant dense<0.000000e+00> : vector<16x128xf32>
    %10 = tpu.matmul %8, %9, %cst_8 {dimension_numbers = #tpu.dot_dimension_numbers<[1], [0], [0], [1], [0, 0, 1, 1], [], []>} : vector<16x128xbf16>, vector<128x128xbf16>, vector<16x128xf32> -> vector<16x128xf32>
    %c0_9 = arith.constant 0 : index
    %c0_10 = arith.constant 0 : index
    %11 = vector.load %arg5[%c0_9, %c0_10] : memref<1x128xf32, #tpu.memory_space<vmem>>, vector<1x128xf32>
    %12 = vector.broadcast %11 : vector<1x128xf32> to vector<16x128xf32>
    %13 = arith.addf %10, %12 : vector<16x128xf32>
    %cst_11 = arith.constant 0.000000e+00 : f32
    %14 = vector.broadcast %cst_11 : f32 to vector<16x128xf32>
    %15 = arith.maximumf %13, %14 : vector<16x128xf32>
    %16 = arith.truncf %15 : vector<16x128xf32> to vector<16x128xbf16>
    %c0_12 = arith.constant 0 : index
    %c0_13 = arith.constant 0 : index
    %17 = vector.load %arg6[%c0_12, %c0_13] : memref<128x128xbf16, #tpu.memory_space<vmem>>, vector<128x128xbf16>
    %cst_14 = arith.constant dense<0.000000e+00> : vector<16x128xf32>
    %18 = tpu.matmul %16, %17, %cst_14 {dimension_numbers = #tpu.dot_dimension_numbers<[1], [0], [0], [1], [0, 0, 1, 1], [], []>} : vector<16x128xbf16>, vector<128x128xbf16>, vector<16x128xf32> -> vector<16x128xf32>
    %c0_15 = arith.constant 0 : index
    %c0_16 = arith.constant 0 : index
    %19 = vector.load %arg7[%c0_15, %c0_16] : memref<1x128xf32, #tpu.memory_space<vmem>>, vector<1x128xf32>
    %20 = vector.broadcast %19 : vector<1x128xf32> to vector<16x128xf32>
    %21 = arith.addf %18, %20 : vector<16x128xf32>
    %c0_17 = arith.constant 0 : index
    %c0_18 = arith.constant 0 : index
    %22 = vector.load %arg8[%c0_17, %c0_18] : memref<16x128xf32, #tpu.memory_space<vmem>>, vector<16x128xf32>
    tpu.vector_store %arg8[%c0_17, %c0_18], %21 {strides = array<i32>} : memref<16x128xf32, #tpu.memory_space<vmem>>, vector<16x128xf32>,
    return
  }
  func.func @transform_0(%arg0: i32) -> (i32, i32) {
    %c0_i32 = arith.constant 0 : i32
    %c0_i32_0 = arith.constant 0 : i32
    return %arg0, %c0_i32 : i32, i32
  }
  func.func @transform_1(%arg0: i32) -> (i32, i32) {
    %c0_i32 = arith.constant 0 : i32
    %c0_i32_0 = arith.constant 0 : i32
    %c0_i32_1 = arith.constant 0 : i32
    return %c0_i32, %c0_i32_0 : i32, i32
  }
  func.func @transform_2(%arg0: i32) -> (i32, i32) {
    %c0_i32 = arith.constant 0 : i32
    %c0_i32_0 = arith.constant 0 : i32
    %c0_i32_1 = arith.constant 0 : i32
    return %c0_i32, %c0_i32_0 : i32, i32
  }
  func.func @transform_3(%arg0: i32) -> (i32, i32) {
    %c0_i32 = arith.constant 0 : i32
    %c0_i32_0 = arith.constant 0 : i32
    %c0_i32_1 = arith.constant 0 : i32
    return %c0_i32, %c0_i32_0 : i32, i32
  }
  func.func @transform_4(%arg0: i32) -> (i32, i32) {
    %c0_i32 = arith.constant 0 : i32
    %c0_i32_0 = arith.constant 0 : i32
    %c0_i32_1 = arith.constant 0 : i32
    return %c0_i32, %c0_i32_0 : i32, i32
  }
  func.func @transform_5(%arg0: i32) -> (i32, i32) {
    %c0_i32 = arith.constant 0 : i32
    %c0_i32_0 = arith.constant 0 : i32
    %c0_i32_1 = arith.constant 0 : i32
    return %c0_i32, %c0_i32_0 : i32, i32
  }
  func.func @transform_6(%arg0: i32) -> (i32, i32) {
    %c0_i32 = arith.constant 0 : i32
    %c0_i32_0 = arith.constant 0 : i32
    %c0_i32_1 = arith.constant 0 : i32
    return %c0_i32, %c0_i32_0 : i32, i32
  }
  func.func @transform_7(%arg0: i32) -> (i32, i32) {
    %c0_i32 = arith.constant 0 : i32
    %c0_i32_0 = arith.constant 0 : i32
    return %arg0, %c0_i32 : i32, i32
  }
}

</mosaic_0001>

<llo_original>
// kernel: dense_decoder_forward.1
$region0: #{dense_decoder_forward.1}
  #allocation0 [shape = 'u32[]', space=smem, size = 0x4, offset = 0x4, fixed_abs, tag = 'smem constant byte address 0x4 - core index']
  #allocation1 [shape = 'u32[72,128]{1,0:T(1,128)}', space=vmem, size = 0x9000, scoped, tag = 'internal scratch']
  %s0 = inlined_call_operand.vmem [shape: bf16[16,128], index: 0, kind: input, shape index: {}]
  %s1 = inlined_call_operand.hbm [shape: bf16[128,128], index: 1, kind: input, shape index: {}]
  %s2 = inlined_call_operand.vmem [shape: f32[1,128], index: 2, kind: input, shape index: {}]
  %s3 = inlined_call_operand.hbm [shape: bf16[128,128], index: 3, kind: input, shape index: {}]
  %s4 = inlined_call_operand.vmem [shape: f32[1,128], index: 4, kind: input, shape index: {}]
  %s5 = inlined_call_operand.hbm [shape: bf16[128,128], index: 5, kind: input, shape index: {}]
  %s6 = inlined_call_operand.vmem [shape: f32[1,128], index: 6, kind: input, shape index: {}]
  %s7 = inlined_call_operand.vmem [shape: f32[16,128], index: 7, kind: output, shape index: {}]
  %s8 = sld [smem:[#allocation0]]
  $region50: #{dense_decoder_forward.1} parent=0
    _
  %s10 = ssub.s32 1, %s8
  %s11 = scalar_select 0, %s10, %s8
  $region1: #{dense_decoder_forward.1} parent=0
    #allocation2 [shape = 'u8[32768]{0}', space=vmem, size = 0x8000, scoped, tag = 'input window, operand 1, single buffered']
    #allocation3 [shape = 's32[1]{0}', space=sflag, size = 0x4, scoped, tag = 'scoped memory for dense_decoder_forward.1']
    #allocation4 [shape = 'u8[32768]{0}', space=vmem, size = 0x8000, scoped, tag = 'input window, operand 3, single buffered']
    #allocation5 [shape = 's32[1]{0}', space=sflag, size = 0x4, scoped, tag = 'scoped memory for dense_decoder_forward.1']
    #allocation6 [shape = 'u8[32768]{0}', space=vmem, size = 0x8000, scoped, tag = 'input window, operand 5, single buffered']
    %12 = vsyncpa [#allocation3], 0
    %13 = vsyncpa [#allocation5], 0
    // Predicated region
    $region2: #{dense_decoder_forward.1} parent=1 // pred_check
      _
    $region3: #{dense_decoder_forward.1} parent=1 // pred_check_branch
      %15 = sbr.rel (0) target = $region5
    $region4: #{dense_decoder_forward.1} parent=1 // pred_region
      _
    $region5: #{dense_decoder_forward.1} parent=1 // pred_fallthru
      _
    // Predicated region
    $region6: #{dense_decoder_forward.1} parent=1 // pred_check
      _
    $region7: #{dense_decoder_forward.1} parent=1 // pred_check_branch
      %17 = sbr.rel (0) target = $region9
    $region8: #{dense_decoder_forward.1} parent=1 // pred_region
      %19 = vsyncadd [#allocation3], 0
      %s20 = sshll.u32 %s1, 4
      %s21 = int_to_ptr.hbm [resolvable:$true] %s20
      %s22 = sshll.u32 [#allocation2], 4
      %s23 = int_to_ptr.vmem [resolvable:$true] %s22
      %28 = dma.hbm_to_vmem [thread:$0]  %s21, 1024, %s23, [#allocation3], 64, 64, 4
    $region9: #{dense_decoder_forward.1} parent=1 // pred_fallthru
      _
    // Predicated region
    $region10: #{dense_decoder_forward.1} parent=1 // pred_check
      _
    $region11: #{dense_decoder_forward.1} parent=1 // pred_check_branch
      %30 = sbr.rel (0) target = $region13
    $region12: #{dense_decoder_forward.1} parent=1 // pred_region
      _
    $region13: #{dense_decoder_forward.1} parent=1 // pred_fallthru
      _
    // Predicated region
    $region14: #{dense_decoder_forward.1} parent=1 // pred_check
      _
    $region15: #{dense_decoder_forward.1} parent=1 // pred_check_branch
      %32 = sbr.rel (0) target = $region17
    $region16: #{dense_decoder_forward.1} parent=1 // pred_region
      %34 = vsyncadd [#allocation5], 0
      %s35 = sshll.u32 %s3, 4
      %s36 = int_to_ptr.hbm [resolvable:$true] %s35
      %s37 = sshll.u32 [#allocation4], 4
      %s38 = int_to_ptr.vmem [resolvable:$true] %s37
      %43 = dma.hbm_to_vmem [thread:$0]  %s36, 1024, %s38, [#allocation5], 64, 64, 4
    $region17: #{dense_decoder_forward.1} parent=1 // pred_fallthru
      _
    // Predicated region
    $region18: #{dense_decoder_forward.1} parent=1 // pred_check
      _
    $region19: #{dense_decoder_forward.1} parent=1 // pred_check_branch
      %45 = sbr.rel (0) target = $region21
    $region20: #{dense_decoder_forward.1} parent=1 // pred_region
      _
    $region21: #{dense_decoder_forward.1} parent=1 // pred_fallthru
      _
    // Predicated region
    $region22: #{dense_decoder_forward.1} parent=1 // pred_check
      _
    $region23: #{dense_decoder_forward.1} parent=1 // pred_check_branch
      %47 = sbr.rel (0) target = $region25
    $region24: #{dense_decoder_forward.1} parent=1 // pred_region
      %49 = vsyncadd [#allocation5], 0
      %s50 = sshll.u32 %s5, 4
      %s51 = int_to_ptr.hbm [resolvable:$true] %s50
      %s52 = sshll.u32 [#allocation6], 4
      %s53 = int_to_ptr.vmem [resolvable:$true] %s52
      %58 = dma.hbm_to_vmem [thread:$0]  %s51, 1024, %s53, [#allocation5], 64, 64, 4
    $region25: #{dense_decoder_forward.1} parent=1 // pred_fallthru
      _
    // Predicated region
    $region26: #{dense_decoder_forward.1} parent=1 // pred_check
      _
    $region27: #{dense_decoder_forward.1} parent=1 // pred_check_branch
      %60 = sbr.rel (0) target = $region29
    $region28: #{dense_decoder_forward.1} parent=1 // pred_region
      _
    $region29: #{dense_decoder_forward.1} parent=1 // pred_fallthru
      _
    // Predicated region
    $region30: #{dense_decoder_forward.1} parent=1 // pred_check
      _
    $region31: #{dense_decoder_forward.1} parent=1 // pred_check_branch
      %62 = sbr.rel (0) target = $region33
    $region32: #{dense_decoder_forward.1} parent=1 // pred_region
      %64 = dma.done [#allocation3], 1024
    $region33: #{dense_decoder_forward.1} parent=1 // pred_fallthru
      _
    // Predicated region
    $region34: #{dense_decoder_forward.1} parent=1 // pred_check
      _
    $region35: #{dense_decoder_forward.1} parent=1 // pred_check_branch
      %66 = sbr.rel (0) target = $region37
    $region36: #{dense_decoder_forward.1} parent=1 // pred_region
      %68 = dma.done [#allocation5], 1024
    $region37: #{dense_decoder_forward.1} parent=1 // pred_fallthru
      _
    // Predicated region
    $region38: #{dense_decoder_forward.1} parent=1 // pred_check
      _
    $region39: #{dense_decoder_forward.1} parent=1 // pred_check_branch
      %70 = sbr.rel (0) target = $region41
    $region40: #{dense_decoder_forward.1} parent=1 // pred_region
      %72 = dma.done [#allocation5], 1024
    $region41: #{dense_decoder_forward.1} parent=1 // pred_fallthru
      _
    %v73 = vld [vmem:[%s0] sm:$0xf]
    %v74 = vld [vmem:[%s0 + $0x4] sm:$0xf]
    %v75 = vld [vmem:[#allocation2] sm:$0xf]
    %v76 = vld [vmem:[#allocation2 + $0x4] sm:$0xf]
    %v77 = vld [vmem:[#allocation2 + $0x8] sm:$0xf]
    %v78 = vld [vmem:[#allocation2 + $0xc] sm:$0xf]
    %v79 = vld [vmem:[#allocation2 + $0x10] sm:$0xf]
    %v80 = vld [vmem:[#allocation2 + $0x14] sm:$0xf]
    %v81 = vld [vmem:[#allocation2 + $0x18] sm:$0xf]
    %v82 = vld [vmem:[#allocation2 + $0x1c] sm:$0xf]
    %v83 = vld [vmem:[#allocation2 + $0x20] sm:$0xf]
    %v84 = vld [vmem:[#allocation2 + $0x24] sm:$0xf]
    %v85 = vld [vmem:[#allocation2 + $0x28] sm:$0xf]
    %v86 = vld [vmem:[#allocation2 + $0x2c] sm:$0xf]
    %v87 = vld [vmem:[#allocation2 + $0x30] sm:$0xf]
    %v88 = vld [vmem:[#allocation2 + $0x34] sm:$0xf]
    %v89 = vld [vmem:[#allocation2 + $0x38] sm:$0xf]
    %v90 = vld [vmem:[#allocation2 + $0x3c] sm:$0xf]
    %v91 = vld [vmem:[%s2] sm:$0x1]
    %v93 = vperm.slane %v91, 0
    %v97 = vunpack.c.l.b16 %v73
    %v98 = vunpack.c.l.b16 %v74
    %v99 = vpack.c.b16 %v98, %v97
    %v117 = vunpack.c.l.b16 %v75
    %v118 = vunpack.c.l.b16 %v76
    %v119 = vunpack.c.l.b16 %v77
    %v120 = vunpack.c.l.b16 %v78
    %v121 = vunpack.c.l.b16 %v79
    %v122 = vunpack.c.l.b16 %v80
    %v123 = vunpack.c.l.b16 %v81
    %v124 = vunpack.c.l.b16 %v82
    %v125 = vunpack.c.l.b16 %v83
    %v126 = vunpack.c.l.b16 %v84
    %v127 = vunpack.c.l.b16 %v85
    %v128 = vunpack.c.l.b16 %v86
    %v129 = vunpack.c.l.b16 %v87
    %v130 = vunpack.c.l.b16 %v88
    %v131 = vunpack.c.l.b16 %v89
    %v132 = vunpack.c.l.b16 %v90
    %v133 = vpack.c.b16 %v118, %v117
    %v134 = vpack.c.b16 %v120, %v119
    %v135 = vpack.c.b16 %v122, %v121
    %v136 = vpack.c.b16 %v124, %v123
    %v137 = vpack.c.b16 %v126, %v125
    %v138 = vpack.c.b16 %v128, %v127
    %v139 = vpack.c.b16 %v130, %v129
    %v140 = vpack.c.b16 %v132, %v131
    %149 = vmatpush.bf16.msra.mxu0 %v140
    %150 = vmatpush.bf16.msra.mxu0 %v139
    %151 = vmatpush.bf16.msra.mxu0 %v138
    %152 = vmatpush.bf16.msra.mxu0 %v137
    %153 = vmatpush.bf16.msra.mxu0 %v136
    %154 = vmatpush.bf16.msra.mxu0 %v135
    %155 = vmatpush.bf16.msra.mxu0 %v134
    %156 = vmatpush.bf16.msra.mxu0 %v133
    %157 = vmatmul.bf16.gmra.mxu0 %v99
    %v158 = vpop.f32.mrf.mxu0
    %v159 = vadd.f32 %v93, %v158
    %v160 = vpop.f32.mrf.mxu0
    %v161 = vadd.f32 %v93, %v160
    %162 = vdwg.mxu0
    %v163 = vmax.f32 %v159, 0.0
    %v164 = vmax.f32 %v161, 0.0
    %v165 = vpack.c.bf16 %v164, %v163
    %v166 = vld [vmem:[#allocation4] sm:$0xf]
    %v167 = vld [vmem:[#allocation4 + $0x4] sm:$0xf]
    %v168 = vld [vmem:[#allocation4 + $0x8] sm:$0xf]
    %v169 = vld [vmem:[#allocation4 + $0xc] sm:$0xf]
    %v170 = vld [vmem:[#allocation4 + $0x10] sm:$0xf]
    %v171 = vld [vmem:[#allocation4 + $0x14] sm:$0xf]
    %v172 = vld [vmem:[#allocation4 + $0x18] sm:$0xf]
    %v173 = vld [vmem:[#allocation4 + $0x1c] sm:$0xf]
    %v174 = vld [vmem:[#allocation4 + $0x20] sm:$0xf]
    %v175 = vld [vmem:[#allocation4 + $0x24] sm:$0xf]
    %v176 = vld [vmem:[#allocation4 + $0x28] sm:$0xf]
    %v177 = vld [vmem:[#allocation4 + $0x2c] sm:$0xf]
    %v178 = vld [vmem:[#allocation4 + $0x30] sm:$0xf]
    %v179 = vld [vmem:[#allocation4 + $0x34] sm:$0xf]
    %v180 = vld [vmem:[#allocation4 + $0x38] sm:$0xf]
    %v181 = vld [vmem:[#allocation4 + $0x3c] sm:$0xf]
    %v182 = vld [vmem:[%s4] sm:$0x1]
    %v184 = vperm.slane %v182, 0
    %v202 = vunpack.c.l.b16 %v166
    %v203 = vunpack.c.l.b16 %v167
    %v204 = vunpack.c.l.b16 %v168
    %v205 = vunpack.c.l.b16 %v169
    %v206 = vunpack.c.l.b16 %v170
    %v207 = vunpack.c.l.b16 %v171
    %v208 = vunpack.c.l.b16 %v172
    %v209 = vunpack.c.l.b16 %v173
    %v210 = vunpack.c.l.b16 %v174
    %v211 = vunpack.c.l.b16 %v175
    %v212 = vunpack.c.l.b16 %v176
    %v213 = vunpack.c.l.b16 %v177
    %v214 = vunpack.c.l.b16 %v178
    %v215 = vunpack.c.l.b16 %v179
    %v216 = vunpack.c.l.b16 %v180
    %v217 = vunpack.c.l.b16 %v181
    %v218 = vpack.c.b16 %v203, %v202
    %v219 = vpack.c.b16 %v205, %v204
    %v220 = vpack.c.b16 %v207, %v206
    %v221 = vpack.c.b16 %v209, %v208
    %v222 = vpack.c.b16 %v211, %v210
    %v223 = vpack.c.b16 %v213, %v212
    %v224 = vpack.c.b16 %v215, %v214
    %v225 = vpack.c.b16 %v217, %v216
    %234 = vmatpush.bf16.msra.mxu0 %v225
    %235 = vmatpush.bf16.msra.mxu0 %v224
    %236 = vmatpush.bf16.msra.mxu0 %v223
    %237 = vmatpush.bf16.msra.mxu0 %v222
    %238 = vmatpush.bf16.msra.mxu0 %v221
    %239 = vmatpush.bf16.msra.mxu0 %v220
    %240 = vmatpush.bf16.msra.mxu0 %v219
    %241 = vmatpush.bf16.msra.mxu0 %v218
    %242 = vmatmul.bf16.gmra.mxu0 %v165
    %v243 = vpop.f32.mrf.mxu0
    %v244 = vadd.f32 %v184, %v243
    %v245 = vpop.f32.mrf.mxu0
    %v246 = vadd.f32 %v184, %v245
    %247 = vdwg.mxu0
    %v248 = vmax.f32 %v244, 0.0
    %v249 = vmax.f32 %v246, 0.0
    %v250 = vpack.c.bf16 %v249, %v248
    %v251 = vld [vmem:[#allocation6] sm:$0xf]
    %v252 = vld [vmem:[#allocation6 + $0x4] sm:$0xf]
    %v253 = vld [vmem:[#allocation6 + $0x8] sm:$0xf]
    %v254 = vld [vmem:[#allocation6 + $0xc] sm:$0xf]
    %v255 = vld [vmem:[#allocation6 + $0x10] sm:$0xf]
    %v256 = vld [vmem:[#allocation6 + $0x14] sm:$0xf]
    %v257 = vld [vmem:[#allocation6 + $0x18] sm:$0xf]
    %v258 = vld [vmem:[#allocation6 + $0x1c] sm:$0xf]
    %v259 = vld [vmem:[#allocation6 + $0x20] sm:$0xf]
    %v260 = vld [vmem:[#allocation6 + $0x24] sm:$0xf]
    %v261 = vld [vmem:[#allocation6 + $0x28] sm:$0xf]
    %v262 = vld [vmem:[#allocation6 + $0x2c] sm:$0xf]
    %v263 = vld [vmem:[#allocation6 + $0x30] sm:$0xf]
    %v264 = vld [vmem:[#allocation6 + $0x34] sm:$0xf]
    %v265 = vld [vmem:[#allocation6 + $0x38] sm:$0xf]
    %v266 = vld [vmem:[#allocation6 + $0x3c] sm:$0xf]
    %v267 = vld [vmem:[%s6] sm:$0x1]
    %v269 = vperm.slane %v267, 0
    %v287 = vunpack.c.l.b16 %v251
    %v288 = vunpack.c.l.b16 %v252
    %v289 = vunpack.c.l.b16 %v253
    %v290 = vunpack.c.l.b16 %v254
    %v291 = vunpack.c.l.b16 %v255
    %v292 = vunpack.c.l.b16 %v256
    %v293 = vunpack.c.l.b16 %v257
    %v294 = vunpack.c.l.b16 %v258
    %v295 = vunpack.c.l.b16 %v259
    %v296 = vunpack.c.l.b16 %v260
    %v297 = vunpack.c.l.b16 %v261
    %v298 = vunpack.c.l.b16 %v262
    %v299 = vunpack.c.l.b16 %v263
    %v300 = vunpack.c.l.b16 %v264
    %v301 = vunpack.c.l.b16 %v265
    %v302 = vunpack.c.l.b16 %v266
    %v303 = vpack.c.b16 %v288, %v287
    %v304 = vpack.c.b16 %v290, %v289
    %v305 = vpack.c.b16 %v292, %v291
    %v306 = vpack.c.b16 %v294, %v293
    %v307 = vpack.c.b16 %v296, %v295
    %v308 = vpack.c.b16 %v298, %v297
    %v309 = vpack.c.b16 %v300, %v299
    %v310 = vpack.c.b16 %v302, %v301
    %319 = vmatpush.bf16.msra.mxu0 %v310
    %320 = vmatpush.bf16.msra.mxu0 %v309
    %321 = vmatpush.bf16.msra.mxu0 %v308
    %322 = vmatpush.bf16.msra.mxu0 %v307
    %323 = vmatpush.bf16.msra.mxu0 %v306
    %324 = vmatpush.bf16.msra.mxu0 %v305
    %325 = vmatpush.bf16.msra.mxu0 %v304
    %326 = vmatpush.bf16.msra.mxu0 %v303
    %327 = vmatmul.bf16.gmra.mxu0 %v250
    %v328 = vpop.f32.mrf.mxu0
    %v329 = vadd.f32 %v269, %v328
    %v330 = vpop.f32.mrf.mxu0
    %v331 = vadd.f32 %v269, %v330
    %332 = vdwg.mxu0
    %333 = vst [vmem:[%s7] sm:$0xff] %v329
    %334 = vst [vmem:[%s7 + $0x8] sm:$0xff] %v331
    // Predicated region
    $region42: #{dense_decoder_forward.1} parent=1 // pred_check
      _
    $region43: #{dense_decoder_forward.1} parent=1 // pred_check_branch
      %336 = sbr.rel (0) target = $region45
    $region44: #{dense_decoder_forward.1} parent=1 // pred_region
      _
    $region45: #{dense_decoder_forward.1} parent=1 // pred_fallthru
      _
    // Predicated region
    $region46: #{dense_decoder_forward.1} parent=1 // pred_check
      _
    $region47: #{dense_decoder_forward.1} parent=1 // pred_check_branch
      %338 = sbr.rel (0) target = $region49
    $region48: #{dense_decoder_forward.1} parent=1 // pred_region
      _
    $region49: #{dense_decoder_forward.1} parent=1 // pred_fallthru
      _
    %339 = vsyncpa [#allocation3], 1
    %340 = vsyncpa [#allocation5], 1

</llo_original>
